<compile_context>
chip_gen: v7x
topology: tpu7x:2x2x1
jax: 0.10.0
libtpu: 0.0.40
codegen_flags: <defaults>
</compile_context>

<pallas_src>
import functools

import jax
import jax.numpy as jnp
from jax import lax
from jax.experimental import pallas as pl
from jax.experimental.pallas import tpu as pltpu


def _flash_self_attn_kernel(xq_ref, xk_ref, wq_ref, wkv_ref, y_ref,
                            m_ref, l_ref, acc_ref, *,
                            key_dim, t_actual, tk_blk, compute_dtype):
    """Grid = (batch, query-tile, key-tile); the key-tile axis is the reduction.

    xq_ref : (1, in_dim, tq)            query-side slice of x (NCT)
    xk_ref : (1, in_dim, tk)            key/value-side slice of x (NCT)
    wq_ref : (key_dim, in_dim)          conv_Q weight
    wkv_ref: (key_dim + out_dim, in_dim) fused [conv_K; conv_V] weight
    y_ref  : (1, out_dim, tq)           output block (resident across key axis)
    m_ref  : (1, tq)       running row max           (VMEM scratch, f32)
    l_ref  : (1, tq)       running softmax denom     (VMEM scratch, f32)
    acc_ref: (out_dim, tq) unnormalized accumulator  (VMEM scratch, f32)
    """
    ik = pl.program_id(2)
    nk = pl.num_programs(2)

    @pl.when(ik == 0)
    def _():
        m_ref[...] = jnp.full_like(m_ref, -jnp.inf)
        l_ref[...] = jnp.zeros_like(l_ref)
        acc_ref[...] = jnp.zeros_like(acc_ref)

    xq = xq_ref[0].astype(compute_dtype)               # (in_dim, tq)
    xk = xk_ref[0].astype(compute_dtype)               # (in_dim, tk)
    wq = wq_ref[...].astype(compute_dtype)             # (key_dim, in_dim)
    wkv = wkv_ref[...].astype(compute_dtype)           # (key_dim+out_dim, in_dim)

    # Fused 1x1 convs: canonical MXU matmuls with f32 accumulation.
    q = jnp.dot(wq, xq, preferred_element_type=jnp.float32)    # (key_dim, tq)
    kv = jnp.dot(wkv, xk, preferred_element_type=jnp.float32)  # (key_dim+out_dim, tk)
    k = kv[:key_dim]                                    # (key_dim, tk)
    v = kv[key_dim:]                                    # (out_dim, tk)

    # Transposed logits st[j, i] = sum_c k[c, j] q[c, i]  (keys on sublanes,
    # queries on lanes): softmax reductions become sublane ops and the second
    # matmul below is canonical, so no (T, T) transpose is ever materialized.
    st = lax.dot_general(
        k.astype(compute_dtype), q.astype(compute_dtype),
        dimension_numbers=(((0,), (0,)), ((), ())),
        preferred_element_type=jnp.float32)             # (tk, tq)

    # Mask zero-padded key positions (only present when T % tk != 0).
    if t_actual % tk_blk != 0:
        key_idx = ik * tk_blk + lax.broadcasted_iota(jnp.int32, (tk_blk, 1), 0)
        st = jnp.where(key_idx < t_actual, st, -jnp.inf)

    # Online-softmax update; normalization deferred to the last key tile.
    m_prev = m_ref[...]                                  # (1, tq)
    m_new = jnp.maximum(m_prev, jnp.max(st, axis=0, keepdims=True))
    alpha = jnp.exp(m_prev - m_new)                      # (1, tq)
    p = jnp.exp((st - m_new).astype(compute_dtype))      # (tk, tq); bf16 EUP on v6e/v7x
    l_ref[...] = alpha * l_ref[...] + jnp.sum(
        p.astype(jnp.float32), axis=0, keepdims=True)

    # acc[o, i] += sum_j v[o, j] p[j, i]  -> canonical (out_dim, tk) x (tk, tq).
    pv = lax.dot_general(
        v.astype(compute_dtype), p,
        dimension_numbers=(((1,), (0,)), ((), ())),
        preferred_element_type=jnp.float32)              # (out_dim, tq)
    acc_ref[...] = alpha * acc_ref[...] + pv
    m_ref[...] = m_new

    @pl.when(ik == nk - 1)
    def _():
        l = l_ref[...]
        inv = pl.reciprocal(l, approx=True)              # EUP vrcp (free slot)
        inv = inv * (2.0 - l * inv)                      # 1 Newton step -> ~f32 accuracy
        y_ref[0] = (acc_ref[...] * inv).astype(y_ref.dtype)


def _pick_tile(t_pad, max_tile):
    """Largest multiple of 128 that divides t_pad and is <= max_tile."""
    best = 128
    for cand in range(256, min(t_pad, max_tile) + 1, 128):
        if t_pad % cand == 0:
            best = cand
    return best


def _vmem_limit_bytes():
    # Raise the default scoped-VMEM limit, staying well below physical VMEM
    # (128 MiB on v5e/v6e, 64 MiB per TensorCore on v7x).
    try:
        physical = pltpu.get_tpu_info().vmem_capacity_bytes
    except Exception:
        physical = 64 * 1024 * 1024
    return int(min(96 * 1024 * 1024, physical * 3 // 4))


@functools.partial(jax.jit, static_argnames=("compute_dtype", "max_tile"))
def self_attention_layer(x_nct, w_q, w_k, w_v, *,
                         compute_dtype=jnp.float32, max_tile=512):
    """x_nct: (B, in_dim, T) float32 (PyTorch NCT). Returns (B, out_dim, T)."""
    B, in_dim, T = x_nct.shape
    key_dim = w_q.shape[0]
    out_dim = w_v.shape[0]

    # Pad T to a lane-dense multiple of 128; padded keys are masked in-kernel,
    # padded query columns are trimmed below.
    t_pad = ((T + 127) // 128) * 128
    x_p = jnp.pad(x_nct, ((0, 0), (0, 0), (0, t_pad - T))) if t_pad != T else x_nct

    # Tile sizes: multiples of 128 dividing t_pad, capped so the (tk, tq)
    # logits tile stays a few MiB on every generation (v7x has 64 MiB VMEM).
    tq = _pick_tile(t_pad, max_tile)
    tk = _pick_tile(t_pad, max_tile)
    nq = t_pad // tq
    nk = t_pad // tk

    # Fuse K and V conv weights once, already oriented (out_ch, in_ch).
    w_kv = jnp.concatenate([w_k, w_v], axis=0)          # (key_dim+out_dim, in_dim)

    kernel = functools.partial(
        _flash_self_attn_kernel, key_dim=key_dim, t_actual=T, tk_blk=tk,
        compute_dtype=compute_dtype)

    feat = 2 * key_dim + out_dim
    cost = pl.CostEstimate(
        flops=2 * B * (feat * in_dim * T + (key_dim + out_dim) * T * T),
        transcendentals=B * T * T,
        bytes_accessed=4 * (B * T * (2 * in_dim + out_dim) + feat * in_dim),
    )

    y_pad = pl.pallas_call(
        kernel,
        out_shape=jax.ShapeDtypeStruct((B, out_dim, t_pad), x_nct.dtype),
        grid_spec=pltpu.PrefetchScalarGridSpec(
            num_scalar_prefetch=0,
            grid=(B, nq, nk),
            in_specs=[
                pl.BlockSpec((1, in_dim, tq), lambda b, iq, ik: (b, 0, iq)),
                pl.BlockSpec((1, in_dim, tk), lambda b, iq, ik: (b, 0, ik)),
                pl.BlockSpec((key_dim, in_dim), lambda b, iq, ik: (0, 0)),
                pl.BlockSpec((key_dim + out_dim, in_dim),
                             lambda b, iq, ik: (0, 0)),
            ],
            out_specs=pl.BlockSpec((1, out_dim, tq), lambda b, iq, ik: (b, 0, iq)),
            scratch_shapes=[
                pltpu.VMEM((1, tq), jnp.float32),        # running max m
                pltpu.VMEM((1, tq), jnp.float32),        # running denom l
                pltpu.VMEM((out_dim, tq), jnp.float32),  # unnormalized accumulator
            ],
        ),
        compiler_params=pltpu.CompilerParams(
            dimension_semantics=("parallel", "parallel", "arbitrary"),
            vmem_limit_bytes=_vmem_limit_bytes(),
        ),
        cost_estimate=cost,
    )(x_p, x_p, w_q, w_kv)

    return y_pad[:, :, :T] if t_pad != T else y_pad


def _reference(x_nct, w_q, w_k, w_v):
    # Pure-JAX reference mirroring the PyTorch forward exactly.
    Q = jnp.einsum("oc,bct->bot", w_q, x_nct)
    K = jnp.einsum("oc,bct->bot", w_k, x_nct)
    V = jnp.einsum("oc,bct->bot", w_v, x_nct)
    A = jax.nn.softmax(jnp.einsum("bkq,bkt->bqt", Q, K), axis=2)
    y = jnp.einsum("bqt,bot->boq", A, V)
    return y


if __name__ == "__main__":
    # Small shapes consistent with the module (in_dim = 1 + positional chans).
    B, in_dim, T = 2, 4, 16
    key_dim, out_dim = 8, 8

    key = jax.random.PRNGKey(0)
    kx, kq, kk, kv = jax.random.split(key, 4)

    x = jax.random.normal(kx, (B, in_dim, T), dtype=jnp.float32)

    # Conv1d(kernel_size=1, bias=False) weight -> (out_ch, in_ch) after squeeze.
    bound = 1.0 / (in_dim ** 0.5)
    w_q = jax.random.uniform(kq, (key_dim, in_dim), jnp.float32, -bound, bound)
    w_k = jax.random.uniform(kk, (key_dim, in_dim), jnp.float32, -bound, bound)
    w_v = jax.random.uniform(kv, (out_dim, in_dim), jnp.float32, -bound, bound)

    y_ref = _reference(x, w_q, w_k, w_v)

    # Default f32 path (faithful to the PyTorch module, v5e-safe).
    y = self_attention_layer(x, w_q, w_k, w_v)
    jax.block_until_ready(y)
    assert y.shape == (B, out_dim, T), y.shape
    assert jnp.allclose(y, y_ref, atol=1e-4, rtol=1e-4), "f32 mismatch vs ref"

    # bf16 MXU-operand + bf16-exp path (v6e/v7x optimization), f32 accumulation.
    y_bf16 = self_attention_layer(x, w_q, w_k, w_v, compute_dtype=jnp.bfloat16)
    jax.block_until_ready(y_bf16)
    assert y_bf16.shape == (B, out_dim, T), y_bf16.shape
    assert jnp.allclose(y_bf16, y_ref, atol=5e-2, rtol=5e-2), "bf16 mismatch"

    print("KERNEL_OK")
</pallas_src>

<mosaic_0001>
module attributes {stable_mosaic.version = 11 : i64} {
  func.func @_flash_self_attn_kernel(%arg0: i32, %arg1: i32, %arg2: i32, %arg3: memref<1x4x128xf32, #tpu.memory_space<vmem>>, %arg4: memref<1x4x128xf32, #tpu.memory_space<vmem>>, %arg5: memref<8x4xf32, #tpu.memory_space<vmem>>, %arg6: memref<16x4xf32, #tpu.memory_space<vmem>>, %arg7: memref<1x8x128xf32, #tpu.memory_space<vmem>>, %arg8: memref<1x128xf32, #tpu.memory_space<vmem>>, %arg9: memref<1x128xf32, #tpu.memory_space<vmem>>, %arg10: memref<8x128xf32, #tpu.memory_space<vmem>>) attributes {dimension_semantics = [#tpu.dimension_semantics<parallel>, #tpu.dimension_semantics<parallel>, #tpu.dimension_semantics<arbitrary>], iteration_bounds = array<i64: 2, 1, 1>, scalar_prefetch = 0 : i64, scratch_operands = 3 : i64, tpu.core_type = #tpu.core_type<tc>, window_params = [{transform_indices = @transform_0, window_bounds = array<i64: 1, 4, 128>}, {transform_indices = @transform_1, window_bounds = array<i64: 1, 4, 128>}, {pipeline_mode = #tpu.pipeline_mode<synchronous>, transform_indices = @transform_2, window_bounds = array<i64: 8, 4>}, {pipeline_mode = #tpu.pipeline_mode<synchronous>, transform_indices = @transform_3, window_bounds = array<i64: 16, 4>}, {transform_indices = @transform_4, window_bounds = array<i64: 1, 8, 128>}]} {
    %c0_i32 = arith.constant 0 : i32
    %0 = arith.cmpi eq, %arg2, %c0_i32 : i32
    %1 = arith.extui %0 : i1 to i32
    %c0_i32_0 = arith.constant 0 : i32
    %2 = arith.cmpi ne, %1, %c0_i32_0 : i32
    scf.if %2 {
      %cst_30 = arith.constant 0xFF800000 : f32
      %49 = vector.broadcast %cst_30 : f32 to vector<1x128xf32>
      %c0_31 = arith.constant 0 : index
      %c0_32 = arith.constant 0 : index
      %50 = vector.load %arg8[%c0_31, %c0_32] : memref<1x128xf32, #tpu.memory_space<vmem>>, vector<1x128xf32>
      tpu.vector_store %arg8[%c0_31, %c0_32], %49 {strides = array<i32>} : memref<1x128xf32, #tpu.memory_space<vmem>>, vector<1x128xf32>,
      %cst_33 = arith.constant 0.000000e+00 : f32
      %51 = vector.broadcast %cst_33 : f32 to vector<1x128xf32>
      %c0_34 = arith.constant 0 : index
      %c0_35 = arith.constant 0 : index
      %52 = vector.load %arg9[%c0_34, %c0_35] : memref<1x128xf32, #tpu.memory_space<vmem>>, vector<1x128xf32>
      tpu.vector_store %arg9[%c0_34, %c0_35], %51 {strides = array<i32>} : memref<1x128xf32, #tpu.memory_space<vmem>>, vector<1x128xf32>,
      %cst_36 = arith.constant 0.000000e+00 : f32
      %53 = vector.broadcast %cst_36 : f32 to vector<8x128xf32>
      %c0_37 = arith.constant 0 : index
      %c0_38 = arith.constant 0 : index
      %54 = vector.load %arg10[%c0_37, %c0_38] : memref<8x128xf32, #tpu.memory_space<vmem>>, vector<8x128xf32>
      tpu.vector_store %arg10[%c0_37, %c0_38], %53 {strides = array<i32>} : memref<8x128xf32, #tpu.memory_space<vmem>>, vector<8x128xf32>,
    } else {
    }
    %c0 = arith.constant 0 : index
    %c0_1 = arith.constant 0 : index
    %c0_2 = arith.constant 0 : index
    %3 = vector.load %arg3[%c0, %c0_1, %c0_2] : memref<1x4x128xf32, #tpu.memory_space<vmem>>, vector<1x4x128xf32>
    %4 = vector.shape_cast %3 : vector<1x4x128xf32> to vector<4x128xf32>
    %c0_3 = arith.constant 0 : index
    %c0_4 = arith.constant 0 : index
    %c0_5 = arith.constant 0 : index
    %5 = vector.load %arg4[%c0_3, %c0_4, %c0_5] : memref<1x4x128xf32, #tpu.memory_space<vmem>>, vector<1x4x128xf32>
    %6 = vector.shape_cast %5 : vector<1x4x128xf32> to vector<4x128xf32>
    %c0_6 = arith.constant 0 : index
    %c0_7 = arith.constant 0 : index
    %7 = vector.load %arg5[%c0_6, %c0_7] : memref<8x4xf32, #tpu.memory_space<vmem>>, vector<8x4xf32>
    %c0_8 = arith.constant 0 : index
    %c0_9 = arith.constant 0 : index
    %8 = vector.load %arg6[%c0_8, %c0_9] : memref<16x4xf32, #tpu.memory_space<vmem>>, vector<16x4xf32>
    %cst = arith.constant dense<0.000000e+00> : vector<8x128xf32>
    %9 = tpu.matmul %7, %4, %cst {dimension_numbers = #tpu.dot_dimension_numbers<[1], [0], [0], [1], [0, 0, 1, 1], [], []>} : vector<8x4xf32>, vector<4x128xf32>, vector<8x128xf32> -> vector<8x128xf32>
    %cst_10 = arith.constant dense<0.000000e+00> : vector<16x128xf32>
    %10 = tpu.matmul %8, %6, %cst_10 {dimension_numbers = #tpu.dot_dimension_numbers<[1], [0], [0], [1], [0, 0, 1, 1], [], []>} : vector<16x4xf32>, vector<4x128xf32>, vector<16x128xf32> -> vector<16x128xf32>
    %11 = vector.extract_strided_slice %10 {offsets = [0, 0], sizes = [8, 128], strides = [1, 1]} : vector<16x128xf32> to vector<8x128xf32>
    %12 = vector.extract_strided_slice %10 {offsets = [8, 0], sizes = [8, 128], strides = [1, 1]} : vector<16x128xf32> to vector<8x128xf32>
    %cst_11 = arith.constant dense<0.000000e+00> : vector<128x128xf32>
    %13 = tpu.matmul %11, %9, %cst_11 {dimension_numbers = #tpu.dot_dimension_numbers<[0], [0], [1], [1], [0, 1, 1, 1], [], []>} : vector<8x128xf32>, vector<8x128xf32>, vector<128x128xf32> -> vector<128x128xf32>
    %c128_i32 = arith.constant 128 : i32
    %14 = arith.muli %arg2, %c128_i32 : i32
    %15 = tpu.iota {dimensions = array<i32: 0>} : vector<128x1xi32>
    %16 = vector.broadcast %14 : i32 to vector<128x1xi32>
    %17 = arith.addi %16, %15 : vector<128x1xi32>
    %c16_i32 = arith.constant 16 : i32
    %18 = vector.broadcast %c16_i32 : i32 to vector<128x1xi32>
    %19 = arith.cmpi slt, %17, %18 : vector<128x1xi32>
    %cst_12 = arith.constant 0xFF800000 : f32
    %20 = vector.shape_cast %19 : vector<128x1xi1> to vector<128x1xi1>
    %21 = vector.broadcast %20 : vector<128x1xi1> to vector<128x128xi1>
    %22 = vector.broadcast %cst_12 : f32 to vector<128x128xf32>
    %23 = arith.select %21, %13, %22 : vector<128x128xi1>, vector<128x128xf32>
    %c0_13 = arith.constant 0 : index
    %c0_14 = arith.constant 0 : index
    %24 = vector.load %arg8[%c0_13, %c0_14] : memref<1x128xf32, #tpu.memory_space<vmem>>, vector<1x128xf32>
    %cst_15 = arith.constant dense<0xFF800000> : vector<128xf32>
    %25 = vector.multi_reduction <maximumf>, %23, %cst_15 [0] : vector<128x128xf32> to vector<128xf32>
    %26 = vector.shape_cast %25 : vector<128xf32> to vector<1x128xf32>
    %27 = arith.maximumf %24, %26 : vector<1x128xf32>
    %28 = arith.subf %24, %27 : vector<1x128xf32>
    %29 = math.exp %28 : vector<1x128xf32>
    %30 = vector.broadcast %27 : vector<1x128xf32> to vector<128x128xf32>
    %31 = arith.subf %23, %30 : vector<128x128xf32>
    %32 = math.exp %31 : vector<128x128xf32>
    %c0_16 = arith.constant 0 : index
    %c0_17 = arith.constant 0 : index
    %33 = vector.load %arg9[%c0_16, %c0_17] : memref<1x128xf32, #tpu.memory_space<vmem>>, vector<1x128xf32>
    %34 = arith.mulf %29, %33 : vector<1x128xf32>
    %cst_18 = arith.constant dense<0.000000e+00> : vector<128xf32>
    %35 = vector.multi_reduction <add>, %32, %cst_18 [0] : vector<128x128xf32> to vector<128xf32>
    %36 = vector.shape_cast %35 : vector<128xf32> to vector<1x128xf32>
    %37 = arith.addf %34, %36 : vector<1x128xf32>
    %c0_19 = arith.constant 0 : index
    %c0_20 = arith.constant 0 : index
    %38 = vector.load %arg9[%c0_19, %c0_20] : memref<1x128xf32, #tpu.memory_space<vmem>>, vector<1x128xf32>
    tpu.vector_store %arg9[%c0_19, %c0_20], %37 {strides = array<i32>} : memref<1x128xf32, #tpu.memory_space<vmem>>, vector<1x128xf32>,
    %cst_21 = arith.constant dense<0.000000e+00> : vector<8x128xf32>
    %39 = tpu.matmul %12, %32, %cst_21 {dimension_numbers = #tpu.dot_dimension_numbers<[1], [0], [0], [1], [0, 0, 1, 1], [], []>} : vector<8x128xf32>, vector<128x128xf32>, vector<8x128xf32> -> vector<8x128xf32>
    %c0_22 = arith.constant 0 : index
    %c0_23 = arith.constant 0 : index
    %40 = vector.load %arg10[%c0_22, %c0_23] : memref<8x128xf32, #tpu.memory_space<vmem>>, vector<8x128xf32>
    %41 = vector.broadcast %29 : vector<1x128xf32> to vector<8x128xf32>
    %42 = arith.mulf %41, %40 : vector<8x128xf32>
    %43 = arith.addf %42, %39 : vector<8x128xf32>
    %c0_24 = arith.constant 0 : index
    %c0_25 = arith.constant 0 : index
    %44 = vector.load %arg10[%c0_24, %c0_25] : memref<8x128xf32, #tpu.memory_space<vmem>>, vector<8x128xf32>
    tpu.vector_store %arg10[%c0_24, %c0_25], %43 {strides = array<i32>} : memref<8x128xf32, #tpu.memory_space<vmem>>, vector<8x128xf32>,
    %c0_26 = arith.constant 0 : index
    %c0_27 = arith.constant 0 : index
    %45 = vector.load %arg8[%c0_26, %c0_27] : memref<1x128xf32, #tpu.memory_space<vmem>>, vector<1x128xf32>
    tpu.vector_store %arg8[%c0_26, %c0_27], %27 {strides = array<i32>} : memref<1x128xf32, #tpu.memory_space<vmem>>, vector<1x128xf32>,
    %c0_i32_28 = arith.constant 0 : i32
    %46 = arith.cmpi eq, %arg2, %c0_i32_28 : i32
    %47 = arith.extui %46 : i1 to i32
    %c0_i32_29 = arith.constant 0 : i32
    %48 = arith.cmpi ne, %47, %c0_i32_29 : i32
    scf.if %48 {
      %c0_30 = arith.constant 0 : index
      %c0_31 = arith.constant 0 : index
      %49 = vector.load %arg9[%c0_30, %c0_31] : memref<1x128xf32, #tpu.memory_space<vmem>>, vector<1x128xf32>
      %50 = tpu.reciprocal %49 {approx = true} : vector<1x128xf32> -> vector<1x128xf32>
      %51 = arith.mulf %49, %50 : vector<1x128xf32>
      %cst_32 = arith.constant 2.000000e+00 : f32
      %52 = vector.broadcast %cst_32 : f32 to vector<1x128xf32>
      %53 = arith.subf %52, %51 : vector<1x128xf32>
      %54 = arith.mulf %50, %53 : vector<1x128xf32>
      %c0_33 = arith.constant 0 : index
      %c0_34 = arith.constant 0 : index
      %55 = vector.load %arg10[%c0_33, %c0_34] : memref<8x128xf32, #tpu.memory_space<vmem>>, vector<8x128xf32>
      %56 = vector.broadcast %54 : vector<1x128xf32> to vector<8x128xf32>
      %57 = arith.mulf %55, %56 : vector<8x128xf32>
      %c0_35 = arith.constant 0 : index
      %c0_36 = arith.constant 0 : index
      %c0_37 = arith.constant 0 : index
      %58 = vector.load %arg7[%c0_35, %c0_36, %c0_37] : memref<1x8x128xf32, #tpu.memory_space<vmem>>, vector<1x8x128xf32>
      %59 = vector.shape_cast %58 : vector<1x8x128xf32> to vector<8x128xf32>
      %60 = vector.shape_cast %57 : vector<8x128xf32> to vector<1x8x128xf32>
      tpu.vector_store %arg7[%c0_35, %c0_36, %c0_37], %60 {strides = array<i32>} : memref<1x8x128xf32, #tpu.memory_space<vmem>>, vector<1x8x128xf32>,
    } else {
    }
    return
  }
  func.func @transform_0(%arg0: i32, %arg1: i32, %arg2: i32) -> (i32, i32, i32) {
    %c0_i32 = arith.constant 0 : i32
    %c0_i32_0 = arith.constant 0 : i32
    return %arg0, %c0_i32, %arg1 : i32, i32, i32
  }
  func.func @transform_1(%arg0: i32, %arg1: i32, %arg2: i32) -> (i32, i32, i32) {
    %c0_i32 = arith.constant 0 : i32
    %c0_i32_0 = arith.constant 0 : i32
    return %arg0, %c0_i32, %arg2 : i32, i32, i32
  }
  func.func @transform_2(%arg0: i32, %arg1: i32, %arg2: i32) -> (i32, i32) {
    %c0_i32 = arith.constant 0 : i32
    %c0_i32_0 = arith.constant 0 : i32
    %c0_i32_1 = arith.constant 0 : i32
    return %c0_i32, %c0_i32_0 : i32, i32
  }
  func.func @transform_3(%arg0: i32, %arg1: i32, %arg2: i32) -> (i32, i32) {
    %c0_i32 = arith.constant 0 : i32
    %c0_i32_0 = arith.constant 0 : i32
    %c0_i32_1 = arith.constant 0 : i32
    return %c0_i32, %c0_i32_0 : i32, i32
  }
  func.func @transform_4(%arg0: i32, %arg1: i32, %arg2: i32) -> (i32, i32, i32) {
    %c0_i32 = arith.constant 0 : i32
    %c0_i32_0 = arith.constant 0 : i32
    return %arg0, %c0_i32, %arg1 : i32, i32, i32
  }
}

</mosaic_0001>

<llo_original>
// kernel: self_attention_layer.1
$region0: #{self_attention_layer.1}
  #allocation0 [shape = 'u32[]', space=smem, size = 0x4, offset = 0x4, fixed_abs, tag = 'smem constant byte address 0x4 - core index']
  #allocation1 [shape = 'u32[144,128]{1,0:T(1,128)}', space=vmem, size = 0x12000, scoped, tag = 'internal scratch']
  #allocation2 [shape = 'f32[1,128]{1,0:T(1,128)}', space=vmem, size = 0x200, scoped, tag = 'scratch operand']
  #allocation3 [shape = 'f32[1,128]{1,0:T(1,128)}', space=vmem, size = 0x200, scoped, tag = 'scratch operand']
  #allocation4 [shape = 'f32[8,128]{1,0:T(8,128)}', space=vmem, size = 0x1000, scoped, tag = 'scratch operand']
  %s0 = inlined_call_operand.vmem [shape: f32[2,4,128], index: 0, kind: input, shape index: {}, may-alias: {0,1}]
  %s1 = inlined_call_operand.vmem [shape: f32[2,4,128], index: 1, kind: input, shape index: {}, may-alias: {0,1}]
  %s2 = inlined_call_operand.vmem [shape: f32[8,4], index: 2, kind: input, shape index: {}]
  %s3 = inlined_call_operand.vmem [shape: f32[16,4], index: 3, kind: input, shape index: {}]
  %s4 = inlined_call_operand.hbm [shape: f32[2,8,128], index: 4, kind: output, shape index: {}]
  %s5 = sld [smem:[#allocation0]]
  $region57: #{self_attention_layer.1} parent=0
    _
  %s7 = ssub.s32 1, %s5
  %s8 = scalar_select 0, %s7, %s5
  $region1: #{self_attention_layer.1} parent=0
    #allocation5 [shape = 'u8[8192]{0}', space=vmem, size = 0x2000, scoped, tag = 'output window, operand 0']
    #allocation6 [shape = 's32[2]{0}', space=sflag, size = 0x8, scoped, tag = 'scoped memory for self_attention_layer.1']
    %9 = vsyncpa [#allocation6], 0
    %s10 = scalar_lea.sflag [#allocation6], 1
    %11 = vsyncpa %s10, 0
    loop: start=0, step=1, limit=4
    $region2: #{self_attention_layer.1} parent=1 // loop_pre_header
      _
    $region3: #{self_attention_layer.1} parent=1 // loop_header
      %s13 = sphi 0, %s17
      %p14 = scmp.ge.s32.totalorder %s13, 4
      %s20 = sphi 0, %s39
      %s21 = sphi 0, %s35
      %s22 = sphi 0, %s31
      %s23 = sphi 0, %s20
      %s24 = sphi 0, %s21
      %s25 = sphi 0, %s22
      %s26 = sphi 0, %s23
      %s27 = sphi 0, %s24
      %s28 = sphi 0, %s25
      %s44 = sphi 0, %s46
      %s47 = sphi 0, %s44
      %s48 = sphi 0, %s47
      %s64 = sphi 0, %s48
      %s72 = sphi 0, %s74
      %s75 = sphi 0, %s72
      %s76 = sphi 0, %s75
      %s92 = sphi 0, %s76
      %s96 = sphi 0, %s96
      %s98 = sphi 0, %s96
      %s99 = sphi 0, %s98
      %s113 = sphi 0, %s99
      %s117 = sphi 0, %s117
      %s119 = sphi 0, %s117
      %s120 = sphi 0, %s119
      %s134 = sphi 0, %s120
      %s142 = sphi 0, %s144
      %s145 = sphi 0, %s142
      %s146 = sphi 0, %s145
      %s162 = sphi 0, %s146
    $region4: #{self_attention_layer.1} parent=1 // loop_header_branch
      %16 = sbr.rel (%p14) target = $region8
    $region5: #{self_attention_layer.1} parent=1 // loop_body
      %s18 = ssub.s32 %s13, 1
      %s19 = ssub.s32 %s13, 2
      %s29 = sadd.s32 1, %s22
      %p30 = scmp.ge.s32.totalorder %s29, 1
      %s31 = scalar_select %p30, 0, %s29
      %s32 = sadd.s32 1, %s21
      %s33 = scalar_select %p30, %s32, %s21
      %p34 = scmp.ge.s32.totalorder %s33, 1
      %s35 = scalar_select %p34, 0, %s33
      %s36 = sadd.s32 1, %s20
      %s37 = scalar_select %p34, %s36, %s20
      %p38 = scmp.ge.s32.totalorder %s37, 2
      %s39 = scalar_select %p38, 0, %s37
      %s40 = ssub.s32 %s20, %s39
      %s41 = ssub.s32 %s21, %s35
      %s42 = sor.u32 %s40, %s41
      %p43 = scmp.eq.s32.totalorder %s42, 0
      %s45 = sadd.s32 %s44, 1
      %s46 = scalar_select %p43, %s44, %s45
      %p49 = pneg %p43
      %p50 = scmp.eq.s32.totalorder %s13, 1
      %p51 = por %p49, %p50
      %p52 = scmp.ne.s32.totalorder %s44, %s47
      %p53 = scmp.eq.s32.totalorder %s13, 0
      %p54 = por %p52, %p53
      %p55 = scmp.ne.s32.totalorder %s44, %s47
      %p56 = scmp.eq.s32.totalorder %s18, 1
      %p57 = por %p55, %p56
      %p58 = scmp.ne.s32.totalorder %s47, %s48
      %p59 = scmp.eq.s32.totalorder %s18, 0
      %p60 = por %p58, %p59
      %p61 = scmp.ne.s32.totalorder %s47, %s48
      %p62 = scmp.eq.s32.totalorder %s19, 1
      %p63 = por %p61, %p62
      %p65 = scmp.ne.s32.totalorder %s48, %s64
      %p66 = scmp.eq.s32.totalorder %s19, 0
      %p67 = por %p65, %p66
      %s68 = ssub.s32 %s20, %s39
      %s69 = ssub.s32 %s22, %s31
      %s70 = sor.u32 %s68, %s69
      %p71 = scmp.eq.s32.totalorder %s70, 0
      %s73 = sadd.s32 %s72, 1
      %s74 = scalar_select %p71, %s72, %s73
      %p77 = pneg %p71
      %p78 = scmp.eq.s32.totalorder %s13, 1
      %p79 = por %p77, %p78
      %p80 = scmp.ne.s32.totalorder %s72, %s75
      %p81 = scmp.eq.s32.totalorder %s13, 0
      %p82 = por %p80, %p81
      %p83 = scmp.ne.s32.totalorder %s72, %s75
      %p84 = scmp.eq.s32.totalorder %s18, 1
      %p85 = por %p83, %p84
      %p86 = scmp.ne.s32.totalorder %s75, %s76
      %p87 = scmp.eq.s32.totalorder %s18, 0
      %p88 = por %p86, %p87
      %p89 = scmp.ne.s32.totalorder %s75, %s76
      %p90 = scmp.eq.s32.totalorder %s19, 1
      %p91 = por %p89, %p90
      %p93 = scmp.ne.s32.totalorder %s76, %s92
      %p94 = scmp.eq.s32.totalorder %s19, 0
      %p95 = por %p93, %p94
      %s97 = sadd.s32 %s96, 1
      %p100 = scmp.eq.s32.totalorder %s13, 1
      %p101 = scmp.ne.s32.totalorder %s96, %s98
      %p102 = scmp.eq.s32.totalorder %s13, 0
      %p103 = por %p101, %p102
      %p104 = scmp.ne.s32.totalorder %s96, %s98
      %p105 = scmp.eq.s32.totalorder %s18, 1
      %p106 = por %p104, %p105
      %p107 = scmp.ne.s32.totalorder %s98, %s99
      %p108 = scmp.eq.s32.totalorder %s18, 0
      %p109 = por %p107, %p108
      %p110 = scmp.ne.s32.totalorder %s98, %s99
      %p111 = scmp.eq.s32.totalorder %s19, 1
      %p112 = por %p110, %p111
      %p114 = scmp.ne.s32.totalorder %s99, %s113
      %p115 = scmp.eq.s32.totalorder %s19, 0
      %p116 = por %p114, %p115
      %s118 = sadd.s32 %s117, 1
      %p121 = scmp.eq.s32.totalorder %s13, 1
      %p122 = scmp.ne.s32.totalorder %s117, %s119
      %p123 = scmp.eq.s32.totalorder %s13, 0
      %p124 = por %p122, %p123
      %p125 = scmp.ne.s32.totalorder %s117, %s119
      %p126 = scmp.eq.s32.totalorder %s18, 1
      %p127 = por %p125, %p126
      %p128 = scmp.ne.s32.totalorder %s119, %s120
      %p129 = scmp.eq.s32.totalorder %s18, 0
      %p130 = por %p128, %p129
      %p131 = scmp.ne.s32.totalorder %s119, %s120
      %p132 = scmp.eq.s32.totalorder %s19, 1
      %p133 = por %p131, %p132
      %p135 = scmp.ne.s32.totalorder %s120, %s134
      %p136 = scmp.eq.s32.totalorder %s19, 0
      %p137 = por %p135, %p136
      %s138 = ssub.s32 %s20, %s39
      %s139 = ssub.s32 %s21, %s35
      %s140 = sor.u32 %s138, %s139
      %p141 = scmp.eq.s32.totalorder %s140, 0
      %s143 = sadd.s32 %s142, 1
      %s144 = scalar_select %p141, %s142, %s143
      %p147 = pneg %p141
      %p148 = scmp.eq.s32.totalorder %s13, 1
      %p149 = por %p147, %p148
      %p150 = scmp.ne.s32.totalorder %s142, %s145
      %p151 = scmp.eq.s32.totalorder %s13, 0
      %p152 = por %p150, %p151
      %p153 = scmp.ne.s32.totalorder %s142, %s145
      %p154 = scmp.eq.s32.totalorder %s18, 1
      %p155 = por %p153, %p154
      %p156 = scmp.ne.s32.totalorder %s145, %s146
      %p157 = scmp.eq.s32.totalorder %s18, 0
      %p158 = por %p156, %p157
      %p159 = scmp.ne.s32.totalorder %s145, %s146
      %p160 = scmp.eq.s32.totalorder %s19, 1
      %p161 = por %p159, %p160
      %p163 = scmp.ne.s32.totalorder %s146, %s162
      %p164 = scmp.eq.s32.totalorder %s19, 0
      %p165 = por %p163, %p164
      %p166 = scmp.le.s32.totalorder 1, %s13
      %p167 = scmp.lt.s32.totalorder %s13, 3
      %p168 = pnand %p166, %p167
      %p169 = pneg %p168
      // Predicated region
      $region9: #{self_attention_layer.1} parent=5 // pred_check
        _
      $region10: #{self_attention_layer.1} parent=5 // pred_check_branch
        %171 = sbr.rel (%p168) target = $region12
      $region11: #{self_attention_layer.1} parent=5 // pred_region
        %s172 = ssub.s32 %s13, 1
        // Predicated region
        $region13: #{self_attention_layer.1} parent=11 // pred_check
          %p173 = pneg %p109
        $region14: #{self_attention_layer.1} parent=11 // pred_check_branch
          %175 = sbr.rel (%p173) target = $region16
        $region15: #{self_attention_layer.1} parent=11 // pred_region
          _
        $region16: #{self_attention_layer.1} parent=11 // pred_fallthru
          _
        // Predicated region
        $region17: #{self_attention_layer.1} parent=11 // pred_check
          %p176 = pneg %p130
        $region18: #{self_attention_layer.1} parent=11 // pred_check_branch
          %178 = sbr.rel (%p176) target = $region20
        $region19: #{self_attention_layer.1} parent=11 // pred_region
          _
        $region20: #{self_attention_layer.1} parent=11 // pred_fallthru
          _
      $region12: #{self_attention_layer.1} parent=5 // pred_fallthru
        _
      %p179 = scmp.lt.s32.totalorder %s13, 2
      // Predicated region
      $region21: #{self_attention_layer.1} parent=5 // pred_check
        %p180 = pneg %p179
      $region22: #{self_attention_layer.1} parent=5 // pred_check_branch
        %182 = sbr.rel (%p180) target = $region24
      $region23: #{self_attention_layer.1} parent=5 // pred_region
        // Predicated region
        $region25: #{self_attention_layer.1} parent=23 // pred_check
          %p183 = pneg %p54
        $region26: #{self_attention_layer.1} parent=23 // pred_check_branch
          %185 = sbr.rel (%p183) target = $region28
        $region27: #{self_attention_layer.1} parent=23 // pred_region
          %p186 = scmp.lt.s32.totalorder %s20, 1
          %s187 = scalar_select %p186, %s20, 1
          %p188 = scmp.lt.s32.totalorder %s21, 0
          %s189 = scalar_select %p188, %s21, 0
          %s190 = sadd.s32 %s189, %s187
          %s191 = smul.addr %s190, 4
          %s192 = scalar_lea.vmem %s0, %s191
        $region28: #{self_attention_layer.1} parent=23 // pred_fallthru
          _
        // Predicated region
        $region29: #{self_attention_layer.1} parent=23 // pred_check
          %p193 = pneg %p82
        $region30: #{self_attention_layer.1} parent=23 // pred_check_branch
          %195 = sbr.rel (%p193) target = $region32
        $region31: #{self_attention_layer.1} parent=23 // pred_region
          %p196 = scmp.lt.s32.totalorder %s20, 1
          %s197 = scalar_select %p196, %s20, 1
          %p198 = scmp.lt.s32.totalorder %s22, 0
          %s199 = scalar_select %p198, %s22, 0
          %s200 = sadd.s32 %s199, %s197
          %s201 = smul.addr %s200, 4
          %s202 = scalar_lea.vmem %s1, %s201
        $region32: #{self_attention_layer.1} parent=23 // pred_fallthru
          _
      $region24: #{self_attention_layer.1} parent=5 // pred_fallthru
        _
      %p203 = scmp.le.s32.totalorder 1, %s13
      %p204 = scmp.lt.s32.totalorder %s13, 3
      %p205 = pnand %p203, %p204
      %p206 = pneg %p205
      // Predicated region
      $region33: #{self_attention_layer.1} parent=5 // pred_check
        _
      $region34: #{self_attention_layer.1} parent=5 // pred_check_branch
        %208 = sbr.rel (%p205) target = $region36
      $region35: #{self_attention_layer.1} parent=5 // pred_region
        %s209 = ssub.s32 %s13, 1
        %p210 = scmp.lt.s32.totalorder %s23, 1
        %s211 = scalar_select %p210, %s23, 1
        %p212 = scmp.lt.s32.totalorder %s24, 0
        %s213 = scalar_select %p212, %s24, 0
        %s214 = sadd.s32 %s213, %s211
        %s215 = smul.addr %s214, 4
        %s216 = scalar_lea.vmem %s0, %s215
        %p217 = pneg %p60
        %p218 = pneg %p57
        %p219 = scmp.lt.s32.totalorder %s23, 1
        %s220 = scalar_select %p219, %s23, 1
        %p221 = scmp.lt.s32.totalorder %s25, 0
        %s222 = scalar_select %p221, %s25, 0
        %s223 = sadd.s32 %s222, %s220
        %s224 = smul.addr %s223, 4
        %s225 = scalar_lea.vmem %s1, %s224
        %p226 = pneg %p88
        %p227 = pneg %p85
        %p228 = pneg %p109
        %p229 = pneg %p106
        %p230 = pneg %p130
        %p231 = pneg %p127
        %p232 = pneg %p158
        %p233 = pneg %p155
        %s234 = sand.u32 %s145, 1
        %s235 = scalar_lea.sflag [#allocation6], %s234
        %s236 = sand.u32 %s145, 1
        %s237 = smul.addr %s236, 8
        %s238 = scalar_lea.vmem [#allocation5], %s237
        %p239 = scmp.lt.s32.totalorder %s23, 1
        %s240 = scalar_select %p239, %s23, 1
        %p241 = scmp.lt.s32.totalorder %s24, 0
        %s242 = scalar_select %p241, %s24, 0
        %s243 = sadd.s32 %s242, %s240
        %s244 = smul.addr %s243, 4
        %s245 = scalar_lea.vmem %s0, %s244
        %p246 = scmp.lt.s32.totalorder %s23, 1
        %s247 = scalar_select %p246, %s23, 1
        %p248 = scmp.lt.s32.totalorder %s25, 0
        %s249 = scalar_select %p248, %s25, 0
        %s250 = sadd.s32 %s249, %s247
        %s251 = smul.addr %s250, 4
        %s252 = scalar_lea.vmem %s1, %s251
        %p253 = scmp.eq.s32.totalorder %s25, 0
        // Predicated region
        $region37: #{self_attention_layer.1} parent=35 // pred_check
          %p254 = pneg %p253
        $region38: #{self_attention_layer.1} parent=35 // pred_check_branch
          %256 = sbr.rel (%p254) target = $region40
        $region39: #{self_attention_layer.1} parent=35 // pred_region
          %257 = vst [vmem:[#allocation2] sm:$0x1] -inf
          %258 = vst [vmem:[#allocation3] sm:$0x1] 0.0
          %259 = vst [vmem:[#allocation4] sm:$0xff] 0.0
        $region40: #{self_attention_layer.1} parent=35 // pred_fallthru
          _
        %v260 = vld [vmem:[%s245] sm:$0xf]
        %v261 = vld [vmem:[%s252] sm:$0xf]
        %v262 = vld [vmem:[%s2] sm:$0xff]
        %v263 = vld [vmem:[%s3] sm:$0xff]
        %v264 = vld [vmem:[%s3 + $0x8] sm:$0xff]
        %vm265 = vcmask 31744
        %v267 = vsel %vm265, %v262, 0
        %vm269 = vcmask 1043456
        %v271 = vsel %vm269, %v260, 0
        %273 = vmatprep.subr.mxu0 0.0
        %274 = vmatpush1.msra.mxu0 %v271
        %275 = vmatprep.subr.mxu0 0.0
        %276 = vmatpush1.msra.mxu0 0.0
        %277 = vmatprep.subr.mxu0 0.0
        %278 = vmatpush1.msra.mxu0 0.0
        %279 = vmatprep.subr.mxu0 0.0
        %280 = vmatpush1.msra.mxu0 0.0
        %281 = vmatprep.subr.mxu0 0.0
        %282 = vmatpush1.msra.mxu0 0.0
        %283 = vmatprep.subr.mxu0 0.0
        %284 = vmatpush1.msra.mxu0 0.0
        %285 = vmatprep.subr.mxu0 0.0
        %286 = vmatpush1.msra.mxu0 0.0
        %287 = vmatprep.subr.mxu0 0.0
        %288 = vmatpush1.msra.mxu0 0.0
        %289 = vmatprep.subr.mxu0 0.0
        %290 = vmatpush1.msra.mxu0 0.0
        %291 = vmatprep.subr.mxu0 0.0
        %292 = vmatpush1.msra.mxu0 0.0
        %293 = vmatprep.subr.mxu0 0.0
        %294 = vmatpush1.msra.mxu0 0.0
        %295 = vmatprep.subr.mxu0 0.0
        %296 = vmatpush1.msra.mxu0 0.0
        %297 = vmatprep.subr.mxu0 0.0
        %298 = vmatpush1.msra.mxu0 0.0
        %299 = vmatprep.subr.mxu0 0.0
        %300 = vmatpush1.msra.mxu0 0.0
        %301 = vmatprep.subr.mxu0 0.0
        %302 = vmatpush1.msra.mxu0 0.0
        %303 = vmatprep.subr.mxu0 0.0
        %304 = vmatpush1.msra.mxu0 0.0
        %305 = vmatprep.subr.mxu0 0.0
        %306 = vmatpush1.msra.mxu0 0.0
        %307 = vmatprep.subr.mxu0 0.0
        %308 = vmatpush1.msra.mxu0 0.0
        %309 = vmatprep.subr.mxu0 0.0
        %310 = vmatpush1.msra.mxu0 0.0
        %311 = vmatprep.subr.mxu0 0.0
        %312 = vmatpush1.msra.mxu0 0.0
        %313 = vmatprep.subr.mxu0 0.0
        %314 = vmatpush1.msra.mxu0 0.0
        %315 = vmatprep.subr.mxu0 0.0
        %316 = vmatpush1.msra.mxu0 0.0
        %317 = vmatprep.subr.mxu0 0.0
        %318 = vmatpush1.msra.mxu0 0.0
        %319 = vmatprep.subr.mxu0 0.0
        %320 = vmatpush1.msra.mxu0 0.0
        %321 = vmatprep.subr.mxu0 0.0
        %322 = vmatpush1.msra.mxu0 0.0
        %323 = vmatprep.subr.mxu0 0.0
        %324 = vmatpush1.msra.mxu0 0.0
        %325 = vmatprep.subr.mxu0 0.0
        %326 = vmatpush1.msra.mxu0 0.0
        %327 = vmatprep.subr.mxu0 0.0
        %328 = vmatpush1.msra.mxu0 0.0
        %329 = vmatprep.subr.mxu0 0.0
        %330 = vmatpush1.msra.mxu0 0.0
        %331 = vmatprep.subr.mxu0 0.0
        %332 = vmatpush1.msra.mxu0 0.0
        %333 = vmatprep.subr.mxu0 0.0
        %334 = vmatpush1.msra.mxu0 0.0
        %335 = vmatprep.subr.mxu0 0.0
        %336 = vmatpush1.msra.mxu0 0.0
        %337 = vmatprep.mubr.f32.mxu0 0.0
        %338 = vmatmul.mubr.f32.gmra.mrb[0].mxu0 %v267
        %v339 = vpop.f32.mrb[0].mxu0
        %v340 = vadd.f32 0.0, %v339
        %v341 = vpop.f32.mrb[0].mxu0
        %342 = vdwg.mxu0
        %v344 = vsel %vm265, %v263, 0
        %v347 = vsel %vm265, %v264, 0
        %v350 = vsel %vm269, %v261, 0
        %352 = vmatprep.subr.mxu0 0.0
        %353 = vmatpush1.msra.mxu0 %v350
        %354 = vmatprep.subr.mxu0 0.0
        %355 = vmatpush1.msra.mxu0 0.0
        %356 = vmatprep.subr.mxu0 0.0
        %357 = vmatpush1.msra.mxu0 0.0
        %358 = vmatprep.subr.mxu0 0.0
        %359 = vmatpush1.msra.mxu0 0.0
        %360 = vmatprep.subr.mxu0 0.0
        %361 = vmatpush1.msra.mxu0 0.0
        %362 = vmatprep.subr.mxu0 0.0
        %363 = vmatpush1.msra.mxu0 0.0
        %364 = vmatprep.subr.mxu0 0.0
        %365 = vmatpush1.msra.mxu0 0.0
        %366 = vmatprep.subr.mxu0 0.0
        %367 = vmatpush1.msra.mxu0 0.0
        %368 = vmatprep.subr.mxu0 0.0
        %369 = vmatpush1.msra.mxu0 0.0
        %370 = vmatprep.subr.mxu0 0.0
        %371 = vmatpush1.msra.mxu0 0.0
        %372 = vmatprep.subr.mxu0 0.0
        %373 = vmatpush1.msra.mxu0 0.0
        %374 = vmatprep.subr.mxu0 0.0
        %375 = vmatpush1.msra.mxu0 0.0
        %376 = vmatprep.subr.mxu0 0.0
        %377 = vmatpush1.msra.mxu0 0.0
        %378 = vmatprep.subr.mxu0 0.0
        %379 = vmatpush1.msra.mxu0 0.0
        %380 = vmatprep.subr.mxu0 0.0
        %381 = vmatpush1.msra.mxu0 0.0
        %382 = vmatprep.subr.mxu0 0.0
        %383 = vmatpush1.msra.mxu0 0.0
        %384 = vmatprep.subr.mxu0 0.0
        %385 = vmatpush1.msra.mxu0 0.0
        %386 = vmatprep.subr.mxu0 0.0
        %387 = vmatpush1.msra.mxu0 0.0
        %388 = vmatprep.subr.mxu0 0.0
        %389 = vmatpush1.msra.mxu0 0.0
        %390 = vmatprep.subr.mxu0 0.0
        %391 = vmatpush1.msra.mxu0 0.0
        %392 = vmatprep.subr.mxu0 0.0
        %393 = vmatpush1.msra.mxu0 0.0
        %394 = vmatprep.subr.mxu0 0.0
        %395 = vmatpush1.msra.mxu0 0.0
        %396 = vmatprep.subr.mxu0 0.0
        %397 = vmatpush1.msra.mxu0 0.0
        %398 = vmatprep.subr.mxu0 0.0
        %399 = vmatpush1.msra.mxu0 0.0
        %400 = vmatprep.subr.mxu0 0.0
        %401 = vmatpush1.msra.mxu0 0.0
        %402 = vmatprep.subr.mxu0 0.0
        %403 = vmatpush1.msra.mxu0 0.0
        %404 = vmatprep.subr.mxu0 0.0
        %405 = vmatpush1.msra.mxu0 0.0
        %406 = vmatprep.subr.mxu0 0.0
        %407 = vmatpush1.msra.mxu0 0.0
        %408 = vmatprep.subr.mxu0 0.0
        %409 = vmatpush1.msra.mxu0 0.0
        %410 = vmatprep.subr.mxu0 0.0
        %411 = vmatpush1.msra.mxu0 0.0
        %412 = vmatprep.subr.mxu0 0.0
        %413 = vmatpush1.msra.mxu0 0.0
        %414 = vmatprep.subr.mxu0 0.0
        %415 = vmatpush1.msra.mxu0 0.0
        %416 = vmatprep.mubr.f32.mxu0 0.0
        %417 = vmatmul.mubr.f32.gmra.mrb[0].mxu0 %v344
        %v418 = vpop.f32.mrb[0].mxu0
        %v419 = vadd.f32 0.0, %v418
        %v420 = vpop.f32.mrb[0].mxu0
        %421 = vmatprep.mubr.f32.mxu0 0.0
        %422 = vmatmul.mubr.f32.gmra.mrb[0].mxu0 %v347
        %v423 = vpop.f32.mrb[0].mxu0
        %v424 = vadd.f32 0.0, %v423
        %v425 = vpop.f32.mrb[0].mxu0
        %426 = vdwg.mxu0
        %427 = vxpose.xlu0.b32.start [1/16] %v419, 128
        %428 = vxpose.xlu0.b32.cont [2/16] 0.0, 128
        %429 = vxpose.xlu0.b32.cont [3/16] 0.0, 128
        %430 = vxpose.xlu0.b32.cont [4/16] 0.0, 128
        %431 = vxpose.xlu0.b32.cont [5/16] 0.0, 128
        %432 = vxpose.xlu0.b32.cont [6/16] 0.0, 128
        %433 = vxpose.xlu0.b32.cont [7/16] 0.0, 128
        %434 = vxpose.xlu0.b32.cont [8/16] 0.0, 128
        %435 = vxpose.xlu0.b32.cont [9/16] 0.0, 128
        %436 = vxpose.xlu0.b32.cont [10/16] 0.0, 128
        %437 = vxpose.xlu0.b32.cont [11/16] 0.0, 128
        %438 = vxpose.xlu0.b32.cont [12/16] 0.0, 128
        %439 = vxpose.xlu0.b32.cont [13/16] 0.0, 128
        %440 = vxpose.xlu0.b32.cont [14/16] 0.0, 128
        %441 = vxpose.xlu0.b32.cont [15/16] 0.0, 128
        %442 = vxpose.xlu0.b32.end [16/16] 0.0, 128
        %v443 = vpop.trf.xlu0
        %v444 = vpop.trf.xlu0
        %v445 = vpop.trf.xlu0
        %v446 = vpop.trf.xlu0
        %v447 = vpop.trf.xlu0
        %v448 = vpop.trf.xlu0
        %v449 = vpop.trf.xlu0
        %v450 = vpop.trf.xlu0
        %v451 = vpop.trf.xlu0
        %v452 = vpop.trf.xlu0
        %v453 = vpop.trf.xlu0
        %v454 = vpop.trf.xlu0
        %v455 = vpop.trf.xlu0
        %v456 = vpop.trf.xlu0
        %v457 = vpop.trf.xlu0
        %v458 = vpop.trf.xlu0
        %vm459 = vcmask 64512
        %v461 = vsel %vm459, %v443, 0
        %v464 = vsel %vm459, %v444, 0
        %v467 = vsel %vm459, %v445, 0
        %v470 = vsel %vm459, %v446, 0
        %v473 = vsel %vm459, %v447, 0
        %v476 = vsel %vm459, %v448, 0
        %v479 = vsel %vm459, %v449, 0
        %v482 = vsel %vm459, %v450, 0
        %v485 = vsel %vm459, %v451, 0
        %v488 = vsel %vm459, %v452, 0
        %v491 = vsel %vm459, %v453, 0
        %v494 = vsel %vm459, %v454, 0
        %v497 = vsel %vm459, %v455, 0
        %v500 = vsel %vm459, %v456, 0
        %v503 = vsel %vm459, %v457, 0
        %v506 = vsel %vm459, %v458, 0
        %508 = vmatprep.subr.mxu0 0.0
        %509 = vmatpush1.msra.mxu0 %v340
        %510 = vmatprep.subr.mxu0 0.0
        %511 = vmatpush1.msra.mxu0 0.0
        %512 = vmatprep.subr.mxu0 0.0
        %513 = vmatpush1.msra.mxu0 0.0
        %514 = vmatprep.subr.mxu0 0.0
        %515 = vmatpush1.msra.mxu0 0.0
        %516 = vmatprep.subr.mxu0 0.0
        %517 = vmatpush1.msra.mxu0 0.0
        %518 = vmatprep.subr.mxu0 0.0
        %519 = vmatpush1.msra.mxu0 0.0
        %520 = vmatprep.subr.mxu0 0.0
        %521 = vmatpush1.msra.mxu0 0.0
        %522 = vmatprep.subr.mxu0 0.0
        %523 = vmatpush1.msra.mxu0 0.0
        %524 = vmatprep.subr.mxu0 0.0
        %525 = vmatpush1.msra.mxu0 0.0
        %526 = vmatprep.subr.mxu0 0.0
        %527 = vmatpush1.msra.mxu0 0.0
        %528 = vmatprep.subr.mxu0 0.0
        %529 = vmatpush1.msra.mxu0 0.0
        %530 = vmatprep.subr.mxu0 0.0
        %531 = vmatpush1.msra.mxu0 0.0
        %532 = vmatprep.subr.mxu0 0.0
        %533 = vmatpush1.msra.mxu0 0.0
        %534 = vmatprep.subr.mxu0 0.0
        %535 = vmatpush1.msra.mxu0 0.0
        %536 = vmatprep.subr.mxu0 0.0
        %537 = vmatpush1.msra.mxu0 0.0
        %538 = vmatprep.subr.mxu0 0.0
        %539 = vmatpush1.msra.mxu0 0.0
        %540 = vmatprep.subr.mxu0 0.0
        %541 = vmatpush1.msra.mxu0 0.0
        %542 = vmatprep.subr.mxu0 0.0
        %543 = vmatpush1.msra.mxu0 0.0
        %544 = vmatprep.subr.mxu0 0.0
        %545 = vmatpush1.msra.mxu0 0.0
        %546 = vmatprep.subr.mxu0 0.0
        %547 = vmatpush1.msra.mxu0 0.0
        %548 = vmatprep.subr.mxu0 0.0
        %549 = vmatpush1.msra.mxu0 0.0
        %550 = vmatprep.subr.mxu0 0.0
        %551 = vmatpush1.msra.mxu0 0.0
        %552 = vmatprep.subr.mxu0 0.0
        %553 = vmatpush1.msra.mxu0 0.0
        %554 = vmatprep.subr.mxu0 0.0
        %555 = vmatpush1.msra.mxu0 0.0
        %556 = vmatprep.subr.mxu0 0.0
        %557 = vmatpush1.msra.mxu0 0.0
        %558 = vmatprep.subr.mxu0 0.0
        %559 = vmatpush1.msra.mxu0 0.0
        %560 = vmatprep.subr.mxu0 0.0
        %561 = vmatpush1.msra.mxu0 0.0
        %562 = vmatprep.subr.mxu0 0.0
        %563 = vmatpush1.msra.mxu0 0.0
        %564 = vmatprep.subr.mxu0 0.0
        %565 = vmatpush1.msra.mxu0 0.0
        %566 = vmatprep.subr.mxu0 0.0
        %567 = vmatpush1.msra.mxu0 0.0
        %568 = vmatprep.subr.mxu0 0.0
        %569 = vmatpush1.msra.mxu0 0.0
        %570 = vmatprep.subr.mxu0 0.0
        %571 = vmatpush1.msra.mxu0 0.0
        %572 = vmatprep.mubr.f32.mxu0 0.0
        %573 = vmatmul.mubr.f32.gmra.mrb[0].mxu0 %v461
        %v574 = vpop.f32.mrb[0].mxu0
        %v575 = vadd.f32 0.0, %v574
        %v576 = vpop.f32.mrb[0].mxu0
        %577 = vmatprep.mubr.f32.mxu0 0.0
        %578 = vmatmul.mubr.f32.gmra.mrb[0].mxu0 %v464
        %v579 = vpop.f32.mrb[0].mxu0
        %v580 = vadd.f32 0.0, %v579
        %v581 = vpop.f32.mrb[0].mxu0
        %582 = vmatprep.mubr.f32.mxu0 0.0
        %583 = vmatmul.mubr.f32.gmra.mrb[0].mxu0 %v467
        %v584 = vpop.f32.mrb[0].mxu0
        %v585 = vadd.f32 0.0, %v584
        %v586 = vpop.f32.mrb[0].mxu0
        %587 = vmatprep.mubr.f32.mxu0 0.0
        %588 = vmatmul.mubr.f32.gmra.mrb[0].mxu0 %v470
        %v589 = vpop.f32.mrb[0].mxu0
        %v590 = vadd.f32 0.0, %v589
        %v591 = vpop.f32.mrb[0].mxu0
        %592 = vmatprep.mubr.f32.mxu0 0.0
        %593 = vmatmul.mubr.f32.gmra.mrb[0].mxu0 %v473
        %v594 = vpop.f32.mrb[0].mxu0
        %v595 = vadd.f32 0.0, %v594
        %v596 = vpop.f32.mrb[0].mxu0
        %597 = vmatprep.mubr.f32.mxu0 0.0
        %598 = vmatmul.mubr.f32.gmra.mrb[0].mxu0 %v476
        %v599 = vpop.f32.mrb[0].mxu0
        %v600 = vadd.f32 0.0, %v599
        %v601 = vpop.f32.mrb[0].mxu0
        %602 = vmatprep.mubr.f32.mxu0 0.0
        %603 = vmatmul.mubr.f32.gmra.mrb[0].mxu0 %v479
        %v604 = vpop.f32.mrb[0].mxu0
        %v605 = vadd.f32 0.0, %v604
        %v606 = vpop.f32.mrb[0].mxu0
        %607 = vmatprep.mubr.f32.mxu0 0.0
        %608 = vmatmul.mubr.f32.gmra.mrb[0].mxu0 %v482
        %v609 = vpop.f32.mrb[0].mxu0
        %v610 = vadd.f32 0.0, %v609
        %v611 = vpop.f32.mrb[0].mxu0
        %612 = vmatprep.mubr.f32.mxu0 0.0
        %613 = vmatmul.mubr.f32.gmra.mrb[0].mxu0 %v485
        %v614 = vpop.f32.mrb[0].mxu0
        %v615 = vadd.f32 0.0, %v614
        %v616 = vpop.f32.mrb[0].mxu0
        %617 = vmatprep.mubr.f32.mxu0 0.0
        %618 = vmatmul.mubr.f32.gmra.mrb[0].mxu0 %v488
        %v619 = vpop.f32.mrb[0].mxu0
        %v620 = vadd.f32 0.0, %v619
        %v621 = vpop.f32.mrb[0].mxu0
        %622 = vmatprep.mubr.f32.mxu0 0.0
        %623 = vmatmul.mubr.f32.gmra.mrb[0].mxu0 %v491
        %v624 = vpop.f32.mrb[0].mxu0
        %v625 = vadd.f32 0.0, %v624
        %v626 = vpop.f32.mrb[0].mxu0
        %627 = vmatprep.mubr.f32.mxu0 0.0
        %628 = vmatmul.mubr.f32.gmra.mrb[0].mxu0 %v494
        %v629 = vpop.f32.mrb[0].mxu0
        %v630 = vadd.f32 0.0, %v629
        %v631 = vpop.f32.mrb[0].mxu0
        %632 = vmatprep.mubr.f32.mxu0 0.0
        %633 = vmatmul.mubr.f32.gmra.mrb[0].mxu0 %v497
        %v634 = vpop.f32.mrb[0].mxu0
        %v635 = vadd.f32 0.0, %v634
        %v636 = vpop.f32.mrb[0].mxu0
        %637 = vmatprep.mubr.f32.mxu0 0.0
        %638 = vmatmul.mubr.f32.gmra.mrb[0].mxu0 %v500
        %v639 = vpop.f32.mrb[0].mxu0
        %v640 = vadd.f32 0.0, %v639
        %v641 = vpop.f32.mrb[0].mxu0
        %642 = vmatprep.mubr.f32.mxu0 0.0
        %643 = vmatmul.mubr.f32.gmra.mrb[0].mxu0 %v503
        %v644 = vpop.f32.mrb[0].mxu0
        %v645 = vadd.f32 0.0, %v644
        %v646 = vpop.f32.mrb[0].mxu0
        %647 = vmatprep.mubr.f32.mxu0 0.0
        %648 = vmatmul.mubr.f32.gmra.mrb[0].mxu0 %v506
        %v649 = vpop.f32.mrb[0].mxu0
        %v650 = vadd.f32 0.0, %v649
        %v651 = vpop.f32.mrb[0].mxu0
        %652 = vdwg.mxu0
        %s653 = smul.u32 %s25, 128
        %v654 = vlaneseq
        %v655 = vshrl.u32 %v654, 7
        %v656 = vadd.s32 %v655, 8
        %v657 = vadd.s32 %v655, 16
        %v658 = vadd.s32 %v655, 24
        %v659 = vadd.s32 %v655, 32
        %v660 = vadd.s32 %v655, 40
        %v661 = vadd.s32 %v655, 48
        %v662 = vadd.s32 %v655, 56
        %v663 = vadd.s32 %v655, 64
        %v664 = vadd.s32 %v655, 72
        %v665 = vadd.s32 %v655, 80
        %v666 = vadd.s32 %v655, 88
        %v667 = vadd.s32 %v655, 96
        %v668 = vadd.s32 %v655, 104
        %v669 = vadd.s32 %v655, 112
        %v670 = vadd.s32 %v655, 120
        %v671 = vstv %s653
        %v672 = vadd.s32 %v671, %v655
        %v673 = vadd.s32 %v671, %v656
        %v674 = vadd.s32 %v671, %v657
        %v675 = vadd.s32 %v671, %v658
        %v676 = vadd.s32 %v671, %v659
        %v677 = vadd.s32 %v671, %v660
        %v678 = vadd.s32 %v671, %v661
        %v679 = vadd.s32 %v671, %v662
        %v680 = vadd.s32 %v671, %v663
        %v681 = vadd.s32 %v671, %v664
        %v682 = vadd.s32 %v671, %v665
        %v683 = vadd.s32 %v671, %v666
        %v684 = vadd.s32 %v671, %v667
        %v685 = vadd.s32 %v671, %v668
        %v686 = vadd.s32 %v671, %v669
        %v687 = vadd.s32 %v671, %v670
        %vm688 = vcmp.lt.s32.totalorder %v672, 16
        %vm689 = vcmp.lt.s32.totalorder %v673, 16
        %vm690 = vcmp.lt.s32.totalorder %v674, 16
        %vm691 = vcmp.lt.s32.totalorder %v675, 16
        %vm692 = vcmp.lt.s32.totalorder %v676, 16
        %vm693 = vcmp.lt.s32.totalorder %v677, 16
        %vm694 = vcmp.lt.s32.totalorder %v678, 16
        %vm695 = vcmp.lt.s32.totalorder %v679, 16
        %vm696 = vcmp.lt.s32.totalorder %v680, 16
        %vm697 = vcmp.lt.s32.totalorder %v681, 16
        %vm698 = vcmp.lt.s32.totalorder %v682, 16
        %vm699 = vcmp.lt.s32.totalorder %v683, 16
        %vm700 = vcmp.lt.s32.totalorder %v684, 16
        %vm701 = vcmp.lt.s32.totalorder %v685, 16
        %vm702 = vcmp.lt.s32.totalorder %v686, 16
        %vm703 = vcmp.lt.s32.totalorder %v687, 16
        %v704 = vsel %vm688, 1, 0
        %v705 = vsel %vm689, 1, 0
        %v706 = vsel %vm690, 1, 0
        %v707 = vsel %vm691, 1, 0
        %v708 = vsel %vm692, 1, 0
        %v709 = vsel %vm693, 1, 0
        %v710 = vsel %vm694, 1, 0
        %v711 = vsel %vm695, 1, 0
        %v712 = vsel %vm696, 1, 0
        %v713 = vsel %vm697, 1, 0
        %v714 = vsel %vm698, 1, 0
        %v715 = vsel %vm699, 1, 0
        %v716 = vsel %vm700, 1, 0
        %v717 = vsel %vm701, 1, 0
        %v718 = vsel %vm702, 1, 0
        %v719 = vsel %vm703, 1, 0
        %vm720 = vcmp.eq.s32.totalorder %v704, 1
        %vm721 = vcmp.eq.s32.totalorder %v705, 1
        %vm722 = vcmp.eq.s32.totalorder %v706, 1
        %vm723 = vcmp.eq.s32.totalorder %v707, 1
        %vm724 = vcmp.eq.s32.totalorder %v708, 1
        %vm725 = vcmp.eq.s32.totalorder %v709, 1
        %vm726 = vcmp.eq.s32.totalorder %v710, 1
        %vm727 = vcmp.eq.s32.totalorder %v711, 1
        %vm728 = vcmp.eq.s32.totalorder %v712, 1
        %vm729 = vcmp.eq.s32.totalorder %v713, 1
        %vm730 = vcmp.eq.s32.totalorder %v714, 1
        %vm731 = vcmp.eq.s32.totalorder %v715, 1
        %vm732 = vcmp.eq.s32.totalorder %v716, 1
        %vm733 = vcmp.eq.s32.totalorder %v717, 1
        %vm734 = vcmp.eq.s32.totalorder %v718, 1
        %vm735 = vcmp.eq.s32.totalorder %v719, 1
        %v736 = vsel %vm720, %v575, -inf
        %v737 = vsel %vm721, %v580, -inf
        %v738 = vsel %vm722, %v585, -inf
        %v739 = vsel %vm723, %v590, -inf
        %v740 = vsel %vm724, %v595, -inf
        %v741 = vsel %vm725, %v600, -inf
        %v742 = vsel %vm726, %v605, -inf
        %v743 = vsel %vm727, %v610, -inf
        %v744 = vsel %vm728, %v615, -inf
        %v745 = vsel %vm729, %v620, -inf
        %v746 = vsel %vm730, %v625, -inf
        %v747 = vsel %vm731, %v630, -inf
        %v748 = vsel %vm732, %v635, -inf
        %v749 = vsel %vm733, %v640, -inf
        %v750 = vsel %vm734, %v645, -inf
        %v751 = vsel %vm735, %v650, -inf
        %v752 = vld [vmem:[#allocation2] sm:$0x1]
        %v753 = vmax.f32 %v736, %v740
        %v754 = vmax.f32 %v737, %v741
        %v755 = vmax.f32 %v738, %v742
        %v756 = vmax.f32 %v739, %v743
        %v757 = vmax.f32 %v753, %v744
        %v758 = vmax.f32 %v754, %v745
        %v759 = vmax.f32 %v755, %v746
        %v760 = vmax.f32 %v756, %v747
        %v761 = vmax.f32 %v757, %v748
        %v762 = vmax.f32 %v758, %v749
        %v763 = vmax.f32 %v759, %v750
        %v764 = vmax.f32 %v760, %v751
        %v765 = vmax.f32 %v761, %v762
        %v766 = vmax.f32 %v763, %v764
        %v767 = vmax.f32 %v765, %v766
        %v768 = vrot.slane %v767, 4
        %v769 = vmax.f32 %v767, %v768
        %v770 = vrot.slane %v769, 2
        %v771 = vmax.f32 %v769, %v770
        %v772 = vrot.slane %v771, 1
        %v773 = vmax.f32 %v771, %v772
        %v774 = vmax.f32 %v752, %v773
        %v775 = vsub.f32 %v752, %v774
        %v776 = vmul.f32 %v775, 1.442695
        %v777 = vpow.pop %v776
        %v779 = vlaneseq
        %v780 = vshrl.u32 %v779, 7
        %v781 = vsub.s32 0, %v780
        %v782 = vrot.slane %v774, %v781
        %v784 = vsub.f32 %v736, %v782
        %v785 = vsub.f32 %v737, %v782
        %v786 = vsub.f32 %v738, %v782
        %v787 = vsub.f32 %v739, %v782
        %v788 = vsub.f32 %v740, %v782
        %v789 = vsub.f32 %v741, %v782
        %v790 = vsub.f32 %v742, %v782
        %v791 = vsub.f32 %v743, %v782
        %v792 = vsub.f32 %v744, %v782
        %v793 = vsub.f32 %v745, %v782
        %v794 = vsub.f32 %v746, %v782
        %v795 = vsub.f32 %v747, %v782
        %v796 = vsub.f32 %v748, %v782
        %v797 = vsub.f32 %v749, %v782
        %v798 = vsub.f32 %v750, %v782
        %v799 = vsub.f32 %v751, %v782
        %v800 = vmul.f32 %v784, 1.442695
        %v801 = vpow.pop %v800
        %v802 = vmul.f32 %v785, 1.442695
        %v803 = vpow.pop %v802
        %v804 = vmul.f32 %v786, 1.442695
        %v805 = vpow.pop %v804
        %v806 = vmul.f32 %v787, 1.442695
        %v807 = vpow.pop %v806
        %v808 = vmul.f32 %v788, 1.442695
        %v809 = vpow.pop %v808
        %v810 = vmul.f32 %v789, 1.442695
        %v811 = vpow.pop %v810
        %v812 = vmul.f32 %v790, 1.442695
        %v813 = vpow.pop %v812
        %v814 = vmul.f32 %v791, 1.442695
        %v815 = vpow.pop %v814
        %v816 = vmul.f32 %v792, 1.442695
        %v817 = vpow.pop %v816
        %v818 = vmul.f32 %v793, 1.442695
        %v819 = vpow.pop %v818
        %v820 = vmul.f32 %v794, 1.442695
        %v821 = vpow.pop %v820
        %v822 = vmul.f32 %v795, 1.442695
        %v823 = vpow.pop %v822
        %v824 = vmul.f32 %v796, 1.442695
        %v825 = vpow.pop %v824
        %v826 = vmul.f32 %v797, 1.442695
        %v827 = vpow.pop %v826
        %v828 = vmul.f32 %v798, 1.442695
        %v829 = vpow.pop %v828
        %v830 = vmul.f32 %v799, 1.442695
        %v831 = vpow.pop %v830
        %v832 = vld [vmem:[#allocation3] sm:$0x1]
        %v833 = vmul.f32 %v777, %v832
        %v834 = vadd.f32 %v801, %v803
        %v835 = vadd.f32 %v834, %v805
        %v836 = vadd.f32 %v835, %v807
        %v837 = vadd.f32 %v836, %v809
        %v838 = vadd.f32 %v837, %v811
        %v839 = vadd.f32 %v838, %v813
        %v840 = vadd.f32 %v839, %v815
        %v841 = vadd.f32 %v840, %v817
        %v842 = vadd.f32 %v841, %v819
        %v843 = vadd.f32 %v842, %v821
        %v844 = vadd.f32 %v843, %v823
        %v845 = vadd.f32 %v844, %v825
        %v846 = vadd.f32 %v845, %v827
        %v847 = vadd.f32 %v846, %v829
        %v848 = vadd.f32 %v847, %v831
        %v849 = vrot.slane %v848, 4
        %v850 = vadd.f32 %v848, %v849
        %v851 = vrot.slane %v850, 2
        %v852 = vadd.f32 %v850, %v851
        %v853 = vrot.slane %v852, 1
        %v854 = vadd.f32 %v852, %v853
        %v855 = vadd.f32 %v833, %v854
        %856 = vst [vmem:[#allocation3] sm:$0x1] %v855
        %857 = vmatprep.subr.mxu0 0.0
        %858 = vmatpush1.msra.mxu0 %v801
        %859 = vmatprep.subr.mxu0 0.0
        %860 = vmatpush1.msra.mxu0 %v803
        %861 = vmatprep.subr.mxu0 0.0
        %862 = vmatpush1.msra.mxu0 %v805
        %863 = vmatprep.subr.mxu0 0.0
        %864 = vmatpush1.msra.mxu0 %v807
        %865 = vmatprep.subr.mxu0 0.0
        %866 = vmatpush1.msra.mxu0 %v809
        %867 = vmatprep.subr.mxu0 0.0
        %868 = vmatpush1.msra.mxu0 %v811
        %869 = vmatprep.subr.mxu0 0.0
        %870 = vmatpush1.msra.mxu0 %v813
        %871 = vmatprep.subr.mxu0 0.0
        %872 = vmatpush1.msra.mxu0 %v815
        %873 = vmatprep.subr.mxu0 0.0
        %874 = vmatpush1.msra.mxu0 %v817
        %875 = vmatprep.subr.mxu0 0.0
        %876 = vmatpush1.msra.mxu0 %v819
        %877 = vmatprep.subr.mxu0 0.0
        %878 = vmatpush1.msra.mxu0 %v821
        %879 = vmatprep.subr.mxu0 0.0
        %880 = vmatpush1.msra.mxu0 %v823
        %881 = vmatprep.subr.mxu0 0.0
        %882 = vmatpush1.msra.mxu0 %v825
        %883 = vmatprep.subr.mxu0 0.0
        %884 = vmatpush1.msra.mxu0 %v827
        %885 = vmatprep.subr.mxu0 0.0
        %886 = vmatpush1.msra.mxu0 %v829
        %887 = vmatprep.subr.mxu0 0.0
        %888 = vmatpush1.msra.mxu0 %v831
        %889 = vmatprep.subr.mxu0 0.0
        %890 = vmatpush1.msra.mxu0 0.0
        %891 = vmatprep.subr.mxu0 0.0
        %892 = vmatpush1.msra.mxu0 0.0
        %893 = vmatprep.subr.mxu0 0.0
        %894 = vmatpush1.msra.mxu0 0.0
        %895 = vmatprep.subr.mxu0 0.0
        %896 = vmatpush1.msra.mxu0 0.0
        %897 = vmatprep.subr.mxu0 0.0
        %898 = vmatpush1.msra.mxu0 0.0
        %899 = vmatprep.subr.mxu0 0.0
        %900 = vmatpush1.msra.mxu0 0.0
        %901 = vmatprep.subr.mxu0 0.0
        %902 = vmatpush1.msra.mxu0 0.0
        %903 = vmatprep.subr.mxu0 0.0
        %904 = vmatpush1.msra.mxu0 0.0
        %905 = vmatprep.subr.mxu0 0.0
        %906 = vmatpush1.msra.mxu0 0.0
        %907 = vmatprep.subr.mxu0 0.0
        %908 = vmatpush1.msra.mxu0 0.0
        %909 = vmatprep.subr.mxu0 0.0
        %910 = vmatpush1.msra.mxu0 0.0
        %911 = vmatprep.subr.mxu0 0.0
        %912 = vmatpush1.msra.mxu0 0.0
        %913 = vmatprep.subr.mxu0 0.0
        %914 = vmatpush1.msra.mxu0 0.0
        %915 = vmatprep.subr.mxu0 0.0
        %916 = vmatpush1.msra.mxu0 0.0
        %917 = vmatprep.subr.mxu0 0.0
        %918 = vmatpush1.msra.mxu0 0.0
        %919 = vmatprep.subr.mxu0 0.0
        %920 = vmatpush1.msra.mxu0 0.0
        %921 = vmatprep.mubr.f32.mxu0 0.0
        %922 = vmatmul.mubr.f32.gmra.mrb[0].mxu0 %v424
        %v923 = vpop.f32.mrb[0].mxu0
        %v924 = vadd.f32 0.0, %v923
        %v925 = vpop.f32.mrb[0].mxu0
        %926 = vdwg.mxu0
        %v927 = vld [vmem:[#allocation4] sm:$0xff]
        %v929 = vlaneseq
        %v930 = vshrl.u32 %v929, 7
        %v931 = vsub.s32 0, %v930
        %v932 = vrot.slane %v777, %v931
        %v934 = vmul.f32 %v932, %v927
        %v935 = vadd.f32 %v934, %v924
        %936 = vst [vmem:[#allocation4] sm:$0xff] %v935
        %937 = vst [vmem:[#allocation2] sm:$0x1] %v774
        // Predicated region
        $region41: #{self_attention_layer.1} parent=35 // pred_check
          %p938 = pneg %p253
        $region42: #{self_attention_layer.1} parent=35 // pred_check_branch
          %940 = sbr.rel (%p938) target = $region44
        $region43: #{self_attention_layer.1} parent=35 // pred_region
          %v941 = vld [vmem:[#allocation3] sm:$0x1]
          %v942 = vrcp.pop %v941
          %v943 = vmul.f32 %v941, %v942
          %v944 = vsub.f32 2.0, %v943
          %v945 = vmul.f32 %v942, %v944
          %v946 = vld [vmem:[#allocation4] sm:$0xff]
          %v948 = vlaneseq
          %v949 = vshrl.u32 %v948, 7
          %v950 = vsub.s32 0, %v949
          %v951 = vrot.slane %v945, %v950
          %v953 = vmul.f32 %v946, %v951
          %954 = vst [vmem:[%s238] sm:$0xff] %v953
        $region44: #{self_attention_layer.1} parent=35 // pred_fallthru
          _
        %s955 = sand.u32 %s145, 1
        %s956 = scalar_lea.sflag [#allocation6], %s955
        %s957 = sand.u32 %s145, 1
        %s958 = smul.addr %s957, 8
        %s959 = scalar_lea.vmem [#allocation5], %s958
        // Predicated region
        $region45: #{self_attention_layer.1} parent=35 // pred_check
          %p960 = pneg %p155
        $region46: #{self_attention_layer.1} parent=35 // pred_check_branch
          %962 = sbr.rel (%p960) target = $region48
        $region47: #{self_attention_layer.1} parent=35 // pred_region
          %s964 = ssub.s32 128, 128
          %965 = vsyncadd %s956, %s964
          %s966 = sadd.s32 %s24, %s23
          %s967 = smul.addr %s966, 128
          %s968 = scalar_lea.hbm %s4, %s967
          %s970 = sshll.u32 %s959, 4
          %s971 = int_to_ptr.vmem [resolvable:$true] %s970
          %973 = dma.vmem_to_hbm [thread:$0]  %s971, 128, %s968, %s956
        $region48: #{self_attention_layer.1} parent=35 // pred_fallthru
          _
      $region36: #{self_attention_layer.1} parent=5 // pred_fallthru
        _
      %p974 = scmp.le.s32.totalorder 2, %s13
      // Predicated region
      $region49: #{self_attention_layer.1} parent=5 // pred_check
        %p975 = pneg %p974
      $region50: #{self_attention_layer.1} parent=5 // pred_check_branch
        %977 = sbr.rel (%p975) target = $region52
      $region51: #{self_attention_layer.1} parent=5 // pred_region
        %s978 = ssub.s32 %s13, 2
        // Predicated region
        $region53: #{self_attention_layer.1} parent=51 // pred_check
          %p979 = pneg %p161
        $region54: #{self_attention_layer.1} parent=51 // pred_check_branch
          %981 = sbr.rel (%p979) target = $region56
        $region55: #{self_attention_layer.1} parent=51 // pred_region
          %s982 = sand.u32 %s146, 1
          %s983 = scalar_lea.sflag [#allocation6], %s982
          %s984 = sand.u32 %s146, 1
          %s985 = smul.addr %s984, 8
          %s986 = scalar_lea.vmem [#allocation5], %s985
          %987 = dma.done %s983, 128
        $region56: #{self_attention_layer.1} parent=51 // pred_fallthru
          _
      $region52: #{self_attention_layer.1} parent=5 // pred_fallthru
        _
    $region6: #{self_attention_layer.1} parent=1 // loop_footer
      %s17 = sadd.s32 1, %s13
    $region7: #{self_attention_layer.1} parent=1 // loop_footer_branch
      %12 = sbr.rel target = $region3
    $region8: #{self_attention_layer.1} parent=1 // loop_exit
      _
    %988 = vsyncpa [#allocation6], 1
    %s989 = scalar_lea.sflag [#allocation6], 1
    %990 = vsyncpa %s989, 1

</llo_original>
